<compile_context>
chip_gen: v6e
topology: v6e:2x2x1
jax: 0.10.0
libtpu: 0.0.40
codegen_flags: <defaults>
</compile_context>

<pallas_src>
import math

import jax
import jax.numpy as jnp
from jax.experimental import pallas as pl
from jax.experimental.pallas import tpu as pltpu


_GELU_A = 0.7978845608028654              # sqrt(2/pi)
_GELU_B = 0.7978845608028654 * 0.044715   # sqrt(2/pi) * 0.044715


def _mlp_kernel(x_ref, w1_ref, b1_ref, w2_ref, b2_ref, o_ref, acc_ref):
    """Grid = (token tiles [parallel], hidden tiles [arbitrary]).

    Per step: h = x @ W1[:, k-th chunk] + b1_chunk; g = gelu_tanh(h);
    acc += g @ W2[k-th chunk, :].  Finalize adds b2 and casts.
    """
    k = pl.program_id(1)

    @pl.when(k == 0)
    def _init():
        acc_ref[...] = jnp.zeros_like(acc_ref)

    x = x_ref[...]

    # c_fc chunk: (tm, C) @ (C, tH), f32 accumulation on the MXU.
    h = jnp.dot(x, w1_ref[...], preferred_element_type=jnp.float32)
    h = h + b1_ref[...].astype(jnp.float32)

    # tanh-GELU in f32 (matches nn.GELU(approximate='tanh'); f32 VPU/EUP is
    # required for v5e correctness).  Constants folded to cut one full-block
    # multiply/add and one live (tm, tH) temporary.
    g = h * (0.5 + 0.5 * jnp.tanh(h * (_GELU_A + _GELU_B * (h * h))))

    # c_proj chunk: (tm, tH) @ (tH, C), accumulated into f32 scratch.
    acc_ref[...] += jnp.dot(g.astype(w2_ref.dtype), w2_ref[...],
                            preferred_element_type=jnp.float32)

    @pl.when(k == pl.num_programs(1) - 1)
    def _finalize():
        o_ref[...] = (acc_ref[...] + b2_ref[...].astype(jnp.float32)
                      ).astype(o_ref.dtype)


def _round_up(n, m):
    return ((n + m - 1) // m) * m


def _cdiv(a, b):
    return -(-a // b)


def _vmem_capacity_bytes():
    """Per-TensorCore VMEM capacity; conservative (v7x) default if unknown."""
    try:
        info = pltpu.get_tpu_info()
        cap = getattr(info, "vmem_capacity_bytes", None)
        if cap:
            return int(cap)
    except Exception:
        pass
    return 64 << 20


def mlp_pallas(x, w1, b1, w2, b2, *, compute_dtype=jnp.bfloat16,
               tm=None, tile_h=None):
    """nanoGPT MLP forward.

    x:  (B, T, C)
    w1: (C, 4C)   (transpose of PyTorch c_fc.weight),    b1: (4C,)
    w2: (4C, C)   (transpose of PyTorch c_proj.weight),  b2: (C,)

    compute_dtype: dtype of the matmul operands (bf16 default = peak MXU).
    Accumulation and the GELU are always f32; output keeps x's dtype.
    tm / tile_h: optional manual token / hidden tile overrides.
    """
    B, T, C = x.shape
    H = w1.shape[1]
    assert w1.shape == (C, H) and w2.shape == (H, C)
    assert b1.shape == (H,) and b2.shape == (C,)

    out_dtype = x.dtype
    compute_dtype = jnp.dtype(compute_dtype)
    cb = compute_dtype.itemsize
    ob = jnp.dtype(out_dtype).itemsize
    sub = 16 if cb < 4 else 8            # sublane packing (bf16 vs 32-bit)

    vmem_cap = _vmem_capacity_bytes()
    budget = int(0.70 * vmem_cap)        # leave headroom for Mosaic scratch

    # Generation-aware default token tile.
    if tm is None:
        if vmem_cap >= (100 << 20):      # v5e / v6e: 128 MiB VMEM per TC
            tm = 1024
        elif cb >= 4:                    # v7x (64 MiB) with f32 operands
            tm = 256
        else:                            # v7x with bf16 operands
            tm = 512

    M = B * T
    M_pad = _round_up(M, sub)
    tm_eff = max(sub, min((tm // sub) * sub, M_pad))

    # Megacore: the "parallel" token axis only shards across 2 TensorCores if
    # it has >= 2 steps; split the tile when the token count allows it.
    if _cdiv(M_pad, tm_eff) < 2 and M_pad >= 2 * sub:
        tm_eff = _round_up(M_pad // 2, sub)

    # VMEM footprint model (default double-buffered inputs/outputs, f32
    # accumulator scratch, two live (tm, tH) f32 intermediates).
    def need(tm_, th_):
        return (2 * tm_ * C * cb         # x tile
                + 2 * C * th_ * cb       # W1 tile
                + 2 * th_ * 4            # b1 tile (f32)
                + 2 * th_ * C * cb       # W2 tile
                + 2 * C * 4              # b2 (f32)
                + 2 * tm_ * C * ob       # out tile
                + tm_ * C * 4            # f32 accumulator scratch
                + 2 * tm_ * th_ * 4)     # f32 intermediates (h, g)

    if tile_h is not None:
        assert H % tile_h == 0 and (tile_h % 128 == 0 or tile_h == H)
        th_eff = tile_h
    else:
        # Hidden-dim tile: largest divisor of H (lane-dense multiple of 128,
        # or H itself) that fits the budget; shrink tm if nothing fits.
        cands = [H] + [H // d for d in (2, 3, 4, 6, 8, 12, 16, 24, 32)
                       if H % d == 0 and (H // d) % 128 == 0]
        while True:
            th_eff = next((t for t in cands if need(tm_eff, t) <= budget),
                          cands[-1])
            if need(tm_eff, th_eff) <= budget or tm_eff <= sub:
                break
            tm_eff = max(sub, ((tm_eff // 2) // sub) * sub)

    num_m = _cdiv(M_pad, tm_eff)         # ragged last block handled by Pallas
    num_h = H // th_eff

    # Operand preparation: cast once outside the kernel (weights stay bf16
    # resident); pad x only to the sublane multiple (<= 15 rows).
    x2 = x.reshape(M, C)
    if x2.dtype != compute_dtype:
        x2 = x2.astype(compute_dtype)
    if M_pad != M:
        x2 = jnp.pad(x2, ((0, M_pad - M), (0, 0)))

    w1c = w1.astype(compute_dtype)
    w2c = w2.astype(compute_dtype)
    b1r = b1.reshape(1, H).astype(jnp.float32)
    b2r = b2.reshape(1, C).astype(jnp.float32)

    # Explicit VMEM limit, always capped below the physical per-TC capacity.
    vmem_limit = int(min(max(int(1.25 * need(tm_eff, th_eff)) + (2 << 20),
                             32 << 20),
                         int(0.9 * vmem_cap)))

    grid_spec = pltpu.PrefetchScalarGridSpec(
        num_scalar_prefetch=0,
        grid=(num_m, num_h),
        in_specs=[
            pl.BlockSpec((tm_eff, C), lambda i, k: (i, 0)),   # x (resident over k)
            pl.BlockSpec((C, th_eff), lambda i, k: (0, k)),   # W1 chunk
            pl.BlockSpec((1, th_eff), lambda i, k: (0, k)),   # b1 chunk
            pl.BlockSpec((th_eff, C), lambda i, k: (k, 0)),   # W2 chunk
            pl.BlockSpec((1, C), lambda i, k: (0, 0)),        # b2
        ],
        out_specs=pl.BlockSpec((tm_eff, C), lambda i, k: (i, 0)),
        scratch_shapes=[pltpu.VMEM((tm_eff, C), jnp.float32)],
    )

    out2 = pl.pallas_call(
        _mlp_kernel,
        out_shape=jax.ShapeDtypeStruct((M_pad, C), out_dtype),
        grid_spec=grid_spec,
        compiler_params=pltpu.CompilerParams(
            dimension_semantics=("parallel", "arbitrary"),
            vmem_limit_bytes=vmem_limit,
        ),
    )(x2, w1c, b1r, w2c, b2r)

    if M_pad != M:
        out2 = out2[:M]
    return out2.reshape(B, T, C)


def mlp_reference(x, w1, b1, w2, b2):
    """Pure-JAX reference (highest precision) for correctness checking."""
    h = jnp.einsum("btc,ch->bth", x, w1,
                   precision=jax.lax.Precision.HIGHEST) + b1
    inner = _GELU_A * h * (1.0 + 0.044715 * h * h)
    g = 0.5 * h * (1.0 + jnp.tanh(inner))
    return jnp.einsum("bth,hc->btc", g, w2,
                      precision=jax.lax.Precision.HIGHEST) + b2


if __name__ == "__main__":
    # Small shapes, but with C a multiple of 128 so the tiles exercise the
    # same lane-dense layout as production n_embd (768+).
    B, T, C = 2, 8, 128
    H = 4 * C

    key = jax.random.PRNGKey(0)
    kx, kw1, kb1, kw2, kb2 = jax.random.split(key, 5)

    x = jax.random.normal(kx, (B, T, C), dtype=jnp.float32)

    # nn.Linear-style uniform(-1/sqrt(fan_in), +1/sqrt(fan_in)) init.
    bound1 = 1.0 / math.sqrt(C)
    bound2 = 1.0 / math.sqrt(H)
    w1 = jax.random.uniform(kw1, (C, H), jnp.float32, -bound1, bound1)
    b1 = jax.random.uniform(kb1, (H,), jnp.float32, -bound1, bound1)
    w2 = jax.random.uniform(kw2, (H, C), jnp.float32, -bound2, bound2)
    b2 = jax.random.uniform(kb2, (C,), jnp.float32, -bound2, bound2)

    ref = mlp_reference(x, w1, b1, w2, b2)

    # Production default: bf16 MXU operands, f32 accumulation + f32 GELU.
    out_bf16 = jax.block_until_ready(mlp_pallas(x, w1, b1, w2, b2))
    assert out_bf16.shape == (B, T, C) and out_bf16.dtype == x.dtype
    assert jnp.allclose(out_bf16, ref, atol=5e-2, rtol=5e-2)

    # f32 operand path (tight tolerance).
    out_f32 = jax.block_until_ready(
        mlp_pallas(x, w1, b1, w2, b2, compute_dtype=jnp.float32))
    assert jnp.allclose(out_f32, ref, atol=1e-4, rtol=1e-4)

    # Hidden-dim-tiled path (forces 4 k-steps; exercises the f32 accumulator
    # init/accumulate/finalize logic used on v7x / large n_embd).
    out_tiled = jax.block_until_ready(
        mlp_pallas(x, w1, b1, w2, b2, compute_dtype=jnp.float32, tile_h=128))
    assert jnp.allclose(out_tiled, ref, atol=1e-4, rtol=1e-4)

    print("KERNEL_OK")
</pallas_src>

<mosaic_0001>
module attributes {stable_mosaic.version = 11 : i64} {
  func.func @_mlp_kernel(%arg0: i32, %arg1: i32, %arg2: memref<16x128xbf16, #tpu.memory_space<vmem>>, %arg3: memref<128x512xbf16, #tpu.memory_space<vmem>>, %arg4: memref<1x512xf32, #tpu.memory_space<vmem>>, %arg5: memref<512x128xbf16, #tpu.memory_space<vmem>>, %arg6: memref<1x128xf32, #tpu.memory_space<vmem>>, %arg7: memref<16x128xf32, #tpu.memory_space<vmem>>, %arg8: memref<16x128xf32, #tpu.memory_space<vmem>>) attributes {dimension_semantics = [#tpu.dimension_semantics<parallel>, #tpu.dimension_semantics<arbitrary>], iteration_bounds = array<i64: 1, 1>, scalar_prefetch = 0 : i64, scratch_operands = 1 : i64, tpu.core_type = #tpu.core_type<tc>, window_params = [{transform_indices = @transform_0, window_bounds = array<i64: 16, 128>}, {transform_indices = @transform_1, window_bounds = array<i64: 128, 512>}, {transform_indices = @transform_2, window_bounds = array<i64: 1, 512>}, {transform_indices = @transform_3, window_bounds = array<i64: 512, 128>}, {pipeline_mode = #tpu.pipeline_mode<synchronous>, transform_indices = @transform_4, window_bounds = array<i64: 1, 128>}, {transform_indices = @transform_5, window_bounds = array<i64: 16, 128>}]} {
    %c0_i32 = arith.constant 0 : i32
    %0 = arith.cmpi eq, %arg1, %c0_i32 : i32
    %1 = arith.extui %0 : i1 to i32
    %c0_i32_0 = arith.constant 0 : i32
    %2 = arith.cmpi ne, %1, %c0_i32_0 : i32
    scf.if %2 {
      %cst_19 = arith.constant 0.000000e+00 : f32
      %30 = vector.broadcast %cst_19 : f32 to vector<16x128xf32>
      %c0_20 = arith.constant 0 : index
      %c0_21 = arith.constant 0 : index
      %31 = vector.load %arg8[%c0_20, %c0_21] : memref<16x128xf32, #tpu.memory_space<vmem>>, vector<16x128xf32>
      tpu.vector_store %arg8[%c0_20, %c0_21], %30 {strides = array<i32>} : memref<16x128xf32, #tpu.memory_space<vmem>>, vector<16x128xf32>,
    } else {
    }
    %c0 = arith.constant 0 : index
    %c0_1 = arith.constant 0 : index
    %3 = vector.load %arg2[%c0, %c0_1] : memref<16x128xbf16, #tpu.memory_space<vmem>>, vector<16x128xbf16>
    %c0_2 = arith.constant 0 : index
    %c0_3 = arith.constant 0 : index
    %4 = vector.load %arg3[%c0_2, %c0_3] : memref<128x512xbf16, #tpu.memory_space<vmem>>, vector<128x512xbf16>
    %cst = arith.constant dense<0.000000e+00> : vector<16x512xf32>
    %5 = tpu.matmul %3, %4, %cst {dimension_numbers = #tpu.dot_dimension_numbers<[1], [0], [0], [1], [0, 0, 1, 1], [], []>} : vector<16x128xbf16>, vector<128x512xbf16>, vector<16x512xf32> -> vector<16x512xf32>
    %c0_4 = arith.constant 0 : index
    %c0_5 = arith.constant 0 : index
    %6 = vector.load %arg4[%c0_4, %c0_5] : memref<1x512xf32, #tpu.memory_space<vmem>>, vector<1x512xf32>
    %7 = vector.broadcast %6 : vector<1x512xf32> to vector<16x512xf32>
    %8 = arith.addf %5, %7 : vector<16x512xf32>
    %9 = arith.mulf %8, %8 : vector<16x512xf32>
    %cst_6 = arith.constant 0.0356774069 : f32
    %10 = vector.broadcast %cst_6 : f32 to vector<16x512xf32>
    %11 = arith.mulf %10, %9 : vector<16x512xf32>
    %cst_7 = arith.constant 0.797884583 : f32
    %12 = vector.broadcast %cst_7 : f32 to vector<16x512xf32>
    %13 = arith.addf %12, %11 : vector<16x512xf32>
    %14 = arith.mulf %8, %13 : vector<16x512xf32>
    %15 = math.tanh %14 : vector<16x512xf32>
    %cst_8 = arith.constant 5.000000e-01 : f32
    %16 = vector.broadcast %cst_8 : f32 to vector<16x512xf32>
    %17 = arith.mulf %16, %15 : vector<16x512xf32>
    %cst_9 = arith.constant 5.000000e-01 : f32
    %18 = vector.broadcast %cst_9 : f32 to vector<16x512xf32>
    %19 = arith.addf %18, %17 : vector<16x512xf32>
    %20 = arith.mulf %8, %19 : vector<16x512xf32>
    %c0_10 = arith.constant 0 : index
    %c0_11 = arith.constant 0 : index
    %21 = vector.load %arg8[%c0_10, %c0_11] : memref<16x128xf32, #tpu.memory_space<vmem>>, vector<16x128xf32>
    %22 = arith.truncf %20 : vector<16x512xf32> to vector<16x512xbf16>
    %c0_12 = arith.constant 0 : index
    %c0_13 = arith.constant 0 : index
    %23 = vector.load %arg5[%c0_12, %c0_13] : memref<512x128xbf16, #tpu.memory_space<vmem>>, vector<512x128xbf16>
    %cst_14 = arith.constant dense<0.000000e+00> : vector<16x128xf32>
    %24 = tpu.matmul %22, %23, %cst_14 {dimension_numbers = #tpu.dot_dimension_numbers<[1], [0], [0], [1], [0, 0, 1, 1], [], []>} : vector<16x512xbf16>, vector<512x128xbf16>, vector<16x128xf32> -> vector<16x128xf32>
    %25 = arith.addf %21, %24 : vector<16x128xf32>
    %c0_15 = arith.constant 0 : index
    %c0_16 = arith.constant 0 : index
    %26 = vector.load %arg8[%c0_15, %c0_16] : memref<16x128xf32, #tpu.memory_space<vmem>>, vector<16x128xf32>
    tpu.vector_store %arg8[%c0_15, %c0_16], %25 {strides = array<i32>} : memref<16x128xf32, #tpu.memory_space<vmem>>, vector<16x128xf32>,
    %c0_i32_17 = arith.constant 0 : i32
    %27 = arith.cmpi eq, %arg1, %c0_i32_17 : i32
    %28 = arith.extui %27 : i1 to i32
    %c0_i32_18 = arith.constant 0 : i32
    %29 = arith.cmpi ne, %28, %c0_i32_18 : i32
    scf.if %29 {
      %c0_19 = arith.constant 0 : index
      %c0_20 = arith.constant 0 : index
      %30 = vector.load %arg8[%c0_19, %c0_20] : memref<16x128xf32, #tpu.memory_space<vmem>>, vector<16x128xf32>
      %c0_21 = arith.constant 0 : index
      %c0_22 = arith.constant 0 : index
      %31 = vector.load %arg6[%c0_21, %c0_22] : memref<1x128xf32, #tpu.memory_space<vmem>>, vector<1x128xf32>
      %32 = vector.broadcast %31 : vector<1x128xf32> to vector<16x128xf32>
      %33 = arith.addf %30, %32 : vector<16x128xf32>
      %c0_23 = arith.constant 0 : index
      %c0_24 = arith.constant 0 : index
      %34 = vector.load %arg7[%c0_23, %c0_24] : memref<16x128xf32, #tpu.memory_space<vmem>>, vector<16x128xf32>
      tpu.vector_store %arg7[%c0_23, %c0_24], %33 {strides = array<i32>} : memref<16x128xf32, #tpu.memory_space<vmem>>, vector<16x128xf32>,
    } else {
    }
    return
  }
  func.func @transform_0(%arg0: i32, %arg1: i32) -> (i32, i32) {
    %c0_i32 = arith.constant 0 : i32
    %c0_i32_0 = arith.constant 0 : i32
    return %arg0, %c0_i32 : i32, i32
  }
  func.func @transform_1(%arg0: i32, %arg1: i32) -> (i32, i32) {
    %c0_i32 = arith.constant 0 : i32
    %c0_i32_0 = arith.constant 0 : i32
    return %c0_i32, %arg1 : i32, i32
  }
  func.func @transform_2(%arg0: i32, %arg1: i32) -> (i32, i32) {
    %c0_i32 = arith.constant 0 : i32
    %c0_i32_0 = arith.constant 0 : i32
    return %c0_i32, %arg1 : i32, i32
  }
  func.func @transform_3(%arg0: i32, %arg1: i32) -> (i32, i32) {
    %c0_i32 = arith.constant 0 : i32
    %c0_i32_0 = arith.constant 0 : i32
    return %arg1, %c0_i32 : i32, i32
  }
  func.func @transform_4(%arg0: i32, %arg1: i32) -> (i32, i32) {
    %c0_i32 = arith.constant 0 : i32
    %c0_i32_0 = arith.constant 0 : i32
    %c0_i32_1 = arith.constant 0 : i32
    return %c0_i32, %c0_i32_0 : i32, i32
  }
  func.func @transform_5(%arg0: i32, %arg1: i32) -> (i32, i32) {
    %c0_i32 = arith.constant 0 : i32
    %c0_i32_0 = arith.constant 0 : i32
    return %arg0, %c0_i32 : i32, i32
  }
}

</mosaic_0001>

<llo_original>
// kernel: tpu_custom_call.1
$region0: #{tpu_custom_call.1}
  #allocation0 [shape = 'u32[]', space=smem, size = 0x4, offset = 0x4, fixed_abs, tag = 'smem constant byte address 0x4 - core index']
  #allocation1 [shape = 'u32[144,128]{1,0:T(1,128)}', space=vmem, size = 0x12000, scoped, tag = 'internal scratch']
  #allocation2 [shape = 'f32[16,128]{1,0:T(8,128)}', space=vmem, size = 0x2000, scoped, tag = 'scratch operand']
  %s0 = inlined_call_operand.hbm [shape: bf16[16,128], index: 0, kind: input, shape index: {}]
  %s1 = inlined_call_operand.hbm [shape: bf16[128,512], index: 1, kind: input, shape index: {}]
  %s2 = inlined_call_operand.hbm [shape: f32[1,512], index: 2, kind: input, shape index: {}]
  %s3 = inlined_call_operand.hbm [shape: bf16[512,128], index: 3, kind: input, shape index: {}]
  %s4 = inlined_call_operand.vmem [shape: f32[1,128], index: 4, kind: input, shape index: {}]
  %s5 = inlined_call_operand.hbm [shape: f32[16,128], index: 5, kind: output, shape index: {}]
  %s6 = sld [smem:[#allocation0]]
  $region54: #{tpu_custom_call.1} parent=0
    _
  %s8 = ssub.s32 1, %s6
  %s9 = scalar_select 0, %s8, %s6
  $region1: #{tpu_custom_call.1} parent=0
    #allocation3 [shape = 'u8[4096]{0}', space=vmem, size = 0x1000, scoped, tag = 'input window, operand 0, single buffered']
    #allocation4 [shape = 's32[1]{0}', space=sflag, size = 0x4, scoped, tag = 'scoped memory for tpu_custom_call.1']
    #allocation5 [shape = 's32[1]{0}', space=sflag, size = 0x4, scoped, tag = 'scoped memory for tpu_custom_call.1']
    #allocation6 [shape = 'u8[131072]{0}', space=vmem, size = 0x20000, scoped, tag = 'input window, operand 1, single buffered']
    #allocation7 [shape = 's32[1]{0}', space=sflag, size = 0x4, scoped, tag = 'scoped memory for tpu_custom_call.1']
    #allocation8 [shape = 'u8[2048]{0}', space=vmem, size = 0x800, scoped, tag = 'input window, operand 2, single buffered']
    #allocation9 [shape = 'u8[131072]{0}', space=vmem, size = 0x20000, scoped, tag = 'input window, operand 3, single buffered']
    #allocation10 [shape = 's32[1]{0}', space=sflag, size = 0x4, scoped, tag = 'scoped memory for tpu_custom_call.1']
    #allocation11 [shape = 'u8[8192]{0}', space=vmem, size = 0x2000, scoped, tag = 'output window, operand 0, single buffered']
    %10 = vsyncpa [#allocation4], 0
    %11 = vsyncpa [#allocation7], 0
    %12 = vsyncpa [#allocation10], 0
    %13 = vsyncpa [#allocation5], 0
    // Predicated region
    $region2: #{tpu_custom_call.1} parent=1 // pred_check
      _
    $region3: #{tpu_custom_call.1} parent=1 // pred_check_branch
      %15 = sbr.rel (0) target = $region5
    $region4: #{tpu_custom_call.1} parent=1 // pred_region
      %s17 = ssub.s32 128, 128
      %18 = vsyncadd [#allocation4], %s17
      %s19 = sshll.u32 [#allocation3], 4
      %s20 = int_to_ptr.vmem [resolvable:$true] %s19
      %25 = dma.hbm_to_vmem [thread:$0]  %s0, 128, %s20, [#allocation4], 64, 64, 4
    $region5: #{tpu_custom_call.1} parent=1 // pred_fallthru
      _
    // Predicated region
    $region6: #{tpu_custom_call.1} parent=1 // pred_check
      _
    $region7: #{tpu_custom_call.1} parent=1 // pred_check_branch
      %27 = sbr.rel (0) target = $region9
    $region8: #{tpu_custom_call.1} parent=1 // pred_region
      %s29 = ssub.s32 4096, 4096
      %30 = vsyncadd [#allocation7], %s29
      %s31 = sshll.u32 [#allocation6], 4
      %s32 = int_to_ptr.vmem [resolvable:$true] %s31
      %37 = dma.hbm_to_vmem [thread:$0]  %s1, 4096, %s32, [#allocation7], 256, 256, 16
    $region9: #{tpu_custom_call.1} parent=1 // pred_fallthru
      _
    // Predicated region
    $region10: #{tpu_custom_call.1} parent=1 // pred_check
      _
    $region11: #{tpu_custom_call.1} parent=1 // pred_check_branch
      %39 = sbr.rel (0) target = $region13
    $region12: #{tpu_custom_call.1} parent=1 // pred_region
      %s41 = ssub.s32 64, 64
      %42 = vsyncadd [#allocation7], %s41
      %s44 = sshll.u32 [#allocation8], 4
      %s45 = int_to_ptr.vmem [resolvable:$true] %s44
      %47 = dma.hbm_to_vmem [thread:$0]  %s2, 64, %s45, [#allocation7]
    $region13: #{tpu_custom_call.1} parent=1 // pred_fallthru
      _
    // Predicated region
    $region14: #{tpu_custom_call.1} parent=1 // pred_check
      _
    $region15: #{tpu_custom_call.1} parent=1 // pred_check_branch
      %49 = sbr.rel (0) target = $region17
    $region16: #{tpu_custom_call.1} parent=1 // pred_region
      %s51 = ssub.s32 4096, 4096
      %52 = vsyncadd [#allocation10], %s51
      %s53 = sshll.u32 [#allocation9], 4
      %s54 = int_to_ptr.vmem [resolvable:$true] %s53
      %59 = dma.hbm_to_vmem [thread:$0]  %s3, 4096, %s54, [#allocation10], 64, 64, 4
    $region17: #{tpu_custom_call.1} parent=1 // pred_fallthru
      _
    // Predicated region
    $region18: #{tpu_custom_call.1} parent=1 // pred_check
      _
    $region19: #{tpu_custom_call.1} parent=1 // pred_check_branch
      %61 = sbr.rel (0) target = $region21
    $region20: #{tpu_custom_call.1} parent=1 // pred_region
      _
    $region21: #{tpu_custom_call.1} parent=1 // pred_fallthru
      _
    // Predicated region
    $region22: #{tpu_custom_call.1} parent=1 // pred_check
      _
    $region23: #{tpu_custom_call.1} parent=1 // pred_check_branch
      %63 = sbr.rel (0) target = $region25
    $region24: #{tpu_custom_call.1} parent=1 // pred_region
      %64 = dma.done [#allocation4], 128
    $region25: #{tpu_custom_call.1} parent=1 // pred_fallthru
      _
    // Predicated region
    $region26: #{tpu_custom_call.1} parent=1 // pred_check
      _
    $region27: #{tpu_custom_call.1} parent=1 // pred_check_branch
      %66 = sbr.rel (0) target = $region29
    $region28: #{tpu_custom_call.1} parent=1 // pred_region
      %67 = dma.done [#allocation7], 4096
    $region29: #{tpu_custom_call.1} parent=1 // pred_fallthru
      _
    // Predicated region
    $region30: #{tpu_custom_call.1} parent=1 // pred_check
      _
    $region31: #{tpu_custom_call.1} parent=1 // pred_check_branch
      %69 = sbr.rel (0) target = $region33
    $region32: #{tpu_custom_call.1} parent=1 // pred_region
      %70 = dma.done [#allocation7], 64
    $region33: #{tpu_custom_call.1} parent=1 // pred_fallthru
      _
    // Predicated region
    $region34: #{tpu_custom_call.1} parent=1 // pred_check
      _
    $region35: #{tpu_custom_call.1} parent=1 // pred_check_branch
      %72 = sbr.rel (0) target = $region37
    $region36: #{tpu_custom_call.1} parent=1 // pred_region
      %73 = dma.done [#allocation10], 4096
    $region37: #{tpu_custom_call.1} parent=1 // pred_fallthru
      _
    %p75 = scmp.eq.s32.totalorder 0, 0
    // Predicated region
    $region38: #{tpu_custom_call.1} parent=1 // pred_check
      %p76 = pneg %p75
    $region39: #{tpu_custom_call.1} parent=1 // pred_check_branch
      %78 = sbr.rel (%p76) target = $region41
    $region40: #{tpu_custom_call.1} parent=1 // pred_region
      %79 = vst [vmem:[#allocation2] sm:$0xff] 0.0
      %80 = vst [vmem:[#allocation2 + $0x8] sm:$0xff] 0.0
    $region41: #{tpu_custom_call.1} parent=1 // pred_fallthru
      _
    %v81 = vld [vmem:[#allocation3] sm:$0xf]
    %v82 = vld [vmem:[#allocation3 + $0x4] sm:$0xf]
    %v83 = vld [vmem:[#allocation6] sm:$0xff]
    %v84 = vld [vmem:[#allocation6 + $0x8] sm:$0xff]
    %v85 = vld [vmem:[#allocation6 + $0x10] sm:$0xff]
    %v86 = vld [vmem:[#allocation6 + $0x18] sm:$0xff]
    %v87 = vld [vmem:[#allocation6 + $0x20] sm:$0xff]
    %v88 = vld [vmem:[#allocation6 + $0x28] sm:$0xff]
    %v89 = vld [vmem:[#allocation6 + $0x30] sm:$0xff]
    %v90 = vld [vmem:[#allocation6 + $0x38] sm:$0xff]
    %v91 = vld [vmem:[#allocation6 + $0x40] sm:$0xff]
    %v92 = vld [vmem:[#allocation6 + $0x48] sm:$0xff]
    %v93 = vld [vmem:[#allocation6 + $0x50] sm:$0xff]
    %v94 = vld [vmem:[#allocation6 + $0x58] sm:$0xff]
    %v95 = vld [vmem:[#allocation6 + $0x60] sm:$0xff]
    %v96 = vld [vmem:[#allocation6 + $0x68] sm:$0xff]
    %v97 = vld [vmem:[#allocation6 + $0x70] sm:$0xff]
    %v98 = vld [vmem:[#allocation6 + $0x78] sm:$0xff]
    %v99 = vld [vmem:[#allocation6 + $0x80] sm:$0xff]
    %v100 = vld [vmem:[#allocation6 + $0x88] sm:$0xff]
    %v101 = vld [vmem:[#allocation6 + $0x90] sm:$0xff]
    %v102 = vld [vmem:[#allocation6 + $0x98] sm:$0xff]
    %v103 = vld [vmem:[#allocation6 + $0xa0] sm:$0xff]
    %v104 = vld [vmem:[#allocation6 + $0xa8] sm:$0xff]
    %v105 = vld [vmem:[#allocation6 + $0xb0] sm:$0xff]
    %v106 = vld [vmem:[#allocation6 + $0xb8] sm:$0xff]
    %v107 = vld [vmem:[#allocation6 + $0xc0] sm:$0xff]
    %v108 = vld [vmem:[#allocation6 + $0xc8] sm:$0xff]
    %v109 = vld [vmem:[#allocation6 + $0xd0] sm:$0xff]
    %v110 = vld [vmem:[#allocation6 + $0xd8] sm:$0xff]
    %v111 = vld [vmem:[#allocation6 + $0xe0] sm:$0xff]
    %v112 = vld [vmem:[#allocation6 + $0xe8] sm:$0xff]
    %v113 = vld [vmem:[#allocation6 + $0xf0] sm:$0xff]
    %v114 = vld [vmem:[#allocation6 + $0xf8] sm:$0xff]
    %v115 = vld [vmem:[#allocation8] sm:$0xf]
    %v117 = vlaneseq
    %v118 = vshrl.u32 %v117, 7
    %v119 = vsub.s32 0, %v118
    %v120 = vrot.slane %v115, %v119
    %v121 = vlaneseq
    %v122 = vshrl.u32 %v121, 7
    %v123 = vsub.s32 1, %v122
    %v124 = vrot.slane %v115, %v123
    %v125 = vlaneseq
    %v126 = vshrl.u32 %v125, 7
    %v127 = vsub.s32 2, %v126
    %v128 = vrot.slane %v115, %v127
    %v129 = vlaneseq
    %v130 = vshrl.u32 %v129, 7
    %v131 = vsub.s32 3, %v130
    %v132 = vrot.slane %v115, %v131
    %v139 = vunpack.c.l.b16 %v81
    %v140 = vunpack.c.l.b16 %v82
    %v141 = vpack.c.b16 %v140, %v139
    %v175 = vunpack.c.l.b16 %v83
    %v176 = vunpack.c.h.b16 %v83
    %v177 = vunpack.c.l.b16 %v84
    %v178 = vunpack.c.h.b16 %v84
    %v179 = vunpack.c.l.b16 %v85
    %v180 = vunpack.c.h.b16 %v85
    %v181 = vunpack.c.l.b16 %v86
    %v182 = vunpack.c.h.b16 %v86
    %v183 = vunpack.c.l.b16 %v87
    %v184 = vunpack.c.h.b16 %v87
    %v185 = vunpack.c.l.b16 %v88
    %v186 = vunpack.c.h.b16 %v88
    %v187 = vunpack.c.l.b16 %v89
    %v188 = vunpack.c.h.b16 %v89
    %v189 = vunpack.c.l.b16 %v90
    %v190 = vunpack.c.h.b16 %v90
    %v191 = vunpack.c.l.b16 %v91
    %v192 = vunpack.c.h.b16 %v91
    %v193 = vunpack.c.l.b16 %v92
    %v194 = vunpack.c.h.b16 %v92
    %v195 = vunpack.c.l.b16 %v93
    %v196 = vunpack.c.h.b16 %v93
    %v197 = vunpack.c.l.b16 %v94
    %v198 = vunpack.c.h.b16 %v94
    %v199 = vunpack.c.l.b16 %v95
    %v200 = vunpack.c.h.b16 %v95
    %v201 = vunpack.c.l.b16 %v96
    %v202 = vunpack.c.h.b16 %v96
    %v203 = vunpack.c.l.b16 %v97
    %v204 = vunpack.c.h.b16 %v97
    %v205 = vunpack.c.l.b16 %v98
    %v206 = vunpack.c.h.b16 %v98
    %v207 = vunpack.c.l.b16 %v99
    %v208 = vunpack.c.h.b16 %v99
    %v209 = vunpack.c.l.b16 %v100
    %v210 = vunpack.c.h.b16 %v100
    %v211 = vunpack.c.l.b16 %v101
    %v212 = vunpack.c.h.b16 %v101
    %v213 = vunpack.c.l.b16 %v102
    %v214 = vunpack.c.h.b16 %v102
    %v215 = vunpack.c.l.b16 %v103
    %v216 = vunpack.c.h.b16 %v103
    %v217 = vunpack.c.l.b16 %v104
    %v218 = vunpack.c.h.b16 %v104
    %v219 = vunpack.c.l.b16 %v105
    %v220 = vunpack.c.h.b16 %v105
    %v221 = vunpack.c.l.b16 %v106
    %v222 = vunpack.c.h.b16 %v106
    %v223 = vunpack.c.l.b16 %v107
    %v224 = vunpack.c.h.b16 %v107
    %v225 = vunpack.c.l.b16 %v108
    %v226 = vunpack.c.h.b16 %v108
    %v227 = vunpack.c.l.b16 %v109
    %v228 = vunpack.c.h.b16 %v109
    %v229 = vunpack.c.l.b16 %v110
    %v230 = vunpack.c.h.b16 %v110
    %v231 = vunpack.c.l.b16 %v111
    %v232 = vunpack.c.h.b16 %v111
    %v233 = vunpack.c.l.b16 %v112
    %v234 = vunpack.c.h.b16 %v112
    %v235 = vunpack.c.l.b16 %v113
    %v236 = vunpack.c.h.b16 %v113
    %v237 = vunpack.c.l.b16 %v114
    %v238 = vunpack.c.h.b16 %v114
    %v239 = vpack.c.b16 %v179, %v175
    %v240 = vpack.c.b16 %v180, %v176
    %v241 = vpack.c.b16 %v181, %v177
    %v242 = vpack.c.b16 %v182, %v178
    %v243 = vpack.c.b16 %v187, %v183
    %v244 = vpack.c.b16 %v188, %v184
    %v245 = vpack.c.b16 %v189, %v185
    %v246 = vpack.c.b16 %v190, %v186
    %v247 = vpack.c.b16 %v195, %v191
    %v248 = vpack.c.b16 %v196, %v192
    %v249 = vpack.c.b16 %v197, %v193
    %v250 = vpack.c.b16 %v198, %v194
    %v251 = vpack.c.b16 %v203, %v199
    %v252 = vpack.c.b16 %v204, %v200
    %v253 = vpack.c.b16 %v205, %v201
    %v254 = vpack.c.b16 %v206, %v202
    %v255 = vpack.c.b16 %v211, %v207
    %v256 = vpack.c.b16 %v212, %v208
    %v257 = vpack.c.b16 %v213, %v209
    %v258 = vpack.c.b16 %v214, %v210
    %v259 = vpack.c.b16 %v219, %v215
    %v260 = vpack.c.b16 %v220, %v216
    %v261 = vpack.c.b16 %v221, %v217
    %v262 = vpack.c.b16 %v222, %v218
    %v263 = vpack.c.b16 %v227, %v223
    %v264 = vpack.c.b16 %v228, %v224
    %v265 = vpack.c.b16 %v229, %v225
    %v266 = vpack.c.b16 %v230, %v226
    %v267 = vpack.c.b16 %v235, %v231
    %v268 = vpack.c.b16 %v236, %v232
    %v269 = vpack.c.b16 %v237, %v233
    %v270 = vpack.c.b16 %v238, %v234
    %303 = vmatprep.subr.bf16.mxu0 %v268
    %304 = vmatpush1.bf16.msra.mxu0 %v267
    %305 = vmatprep.subr.bf16.mxu0 %v264
    %306 = vmatpush1.bf16.msra.mxu0 %v263
    %307 = vmatprep.subr.bf16.mxu0 %v260
    %308 = vmatpush1.bf16.msra.mxu0 %v259
    %309 = vmatprep.subr.bf16.mxu0 %v256
    %310 = vmatpush1.bf16.msra.mxu0 %v255
    %311 = vmatprep.subr.bf16.mxu0 %v252
    %312 = vmatpush1.bf16.msra.mxu0 %v251
    %313 = vmatprep.subr.bf16.mxu0 %v248
    %314 = vmatpush1.bf16.msra.mxu0 %v247
    %315 = vmatprep.subr.bf16.mxu0 %v244
    %316 = vmatpush1.bf16.msra.mxu0 %v243
    %317 = vmatprep.subr.bf16.mxu0 %v240
    %318 = vmatpush1.bf16.msra.mxu0 %v239
    %319 = vmatprep.subr.bf16.mxu0 0
    %320 = vmatpush2.bf16.msra.mxu0 0
    %321 = vmatprep.subr.bf16.mxu0 0
    %322 = vmatpush2.bf16.msra.mxu0 0
    %323 = vmatprep.subr.bf16.mxu0 0
    %324 = vmatpush2.bf16.msra.mxu0 0
    %325 = vmatprep.subr.bf16.mxu0 0
    %326 = vmatpush2.bf16.msra.mxu0 0
    %327 = vmatprep.subr.bf16.mxu0 0
    %328 = vmatpush2.bf16.msra.mxu0 0
    %329 = vmatprep.subr.bf16.mxu0 0
    %330 = vmatpush2.bf16.msra.mxu0 0
    %331 = vmatprep.subr.bf16.mxu0 0
    %332 = vmatpush2.bf16.msra.mxu0 0
    %333 = vmatprep.subr.bf16.mxu0 0
    %334 = vmatpush2.bf16.msra.mxu0 0
    %335 = vmatprep.mubr.bf16.mxu0 0
    %336 = vmatmul.mubr.bf16.gmra.mxu0 %v141
    %v337 = vpop.f32.mrf.mxu0
    %v338 = vadd.f32 %v120, %v337
    %v339 = vpop.f32.mrf.mxu0
    %v340 = vadd.f32 %v124, %v339
    %v341 = vpop.f32.mrf.mxu0
    %v342 = vadd.f32 %v120, %v341
    %v343 = vpop.f32.mrf.mxu0
    %v344 = vadd.f32 %v124, %v343
    %345 = vdwg.mxu0
    %346 = vmatprep.subr.bf16.mxu0 %v270
    %347 = vmatpush1.bf16.msra.mxu0 %v269
    %348 = vmatprep.subr.bf16.mxu0 %v266
    %349 = vmatpush1.bf16.msra.mxu0 %v265
    %350 = vmatprep.subr.bf16.mxu0 %v262
    %351 = vmatpush1.bf16.msra.mxu0 %v261
    %352 = vmatprep.subr.bf16.mxu0 %v258
    %353 = vmatpush1.bf16.msra.mxu0 %v257
    %354 = vmatprep.subr.bf16.mxu0 %v254
    %355 = vmatpush1.bf16.msra.mxu0 %v253
    %356 = vmatprep.subr.bf16.mxu0 %v250
    %357 = vmatpush1.bf16.msra.mxu0 %v249
    %358 = vmatprep.subr.bf16.mxu0 %v246
    %359 = vmatpush1.bf16.msra.mxu0 %v245
    %360 = vmatprep.subr.bf16.mxu0 %v242
    %361 = vmatpush1.bf16.msra.mxu0 %v241
    %362 = vmatprep.subr.bf16.mxu0 0
    %363 = vmatpush2.bf16.msra.mxu0 0
    %364 = vmatprep.subr.bf16.mxu0 0
    %365 = vmatpush2.bf16.msra.mxu0 0
    %366 = vmatprep.subr.bf16.mxu0 0
    %367 = vmatpush2.bf16.msra.mxu0 0
    %368 = vmatprep.subr.bf16.mxu0 0
    %369 = vmatpush2.bf16.msra.mxu0 0
    %370 = vmatprep.subr.bf16.mxu0 0
    %371 = vmatpush2.bf16.msra.mxu0 0
    %372 = vmatprep.subr.bf16.mxu0 0
    %373 = vmatpush2.bf16.msra.mxu0 0
    %374 = vmatprep.subr.bf16.mxu0 0
    %375 = vmatpush2.bf16.msra.mxu0 0
    %376 = vmatprep.subr.bf16.mxu0 0
    %377 = vmatpush2.bf16.msra.mxu0 0
    %378 = vmatprep.mubr.bf16.mxu0 0
    %379 = vmatmul.mubr.bf16.gmra.mxu0 %v141
    %v380 = vpop.f32.mrf.mxu0
    %v381 = vadd.f32 %v128, %v380
    %v382 = vpop.f32.mrf.mxu0
    %v383 = vadd.f32 %v132, %v382
    %v384 = vpop.f32.mrf.mxu0
    %v385 = vadd.f32 %v128, %v384
    %v386 = vpop.f32.mrf.mxu0
    %v387 = vadd.f32 %v132, %v386
    %388 = vdwg.mxu0
    %v389 = vmul.f32 %v338, %v338
    %v390 = vmul.f32 %v340, %v340
    %v391 = vmul.f32 %v381, %v381
    %v392 = vmul.f32 %v383, %v383
    %v393 = vmul.f32 %v342, %v342
    %v394 = vmul.f32 %v344, %v344
    %v395 = vmul.f32 %v385, %v385
    %v396 = vmul.f32 %v387, %v387
    %v397 = vmul.f32 %v389, 0.035677407
    %v398 = vmul.f32 %v390, 0.035677407
    %v399 = vmul.f32 %v391, 0.035677407
    %v400 = vmul.f32 %v392, 0.035677407
    %v401 = vmul.f32 %v393, 0.035677407
    %v402 = vmul.f32 %v394, 0.035677407
    %v403 = vmul.f32 %v395, 0.035677407
    %v404 = vmul.f32 %v396, 0.035677407
    %v405 = vadd.f32 %v397, 0.7978846
    %v406 = vadd.f32 %v398, 0.7978846
    %v407 = vadd.f32 %v399, 0.7978846
    %v408 = vadd.f32 %v400, 0.7978846
    %v409 = vadd.f32 %v401, 0.7978846
    %v410 = vadd.f32 %v402, 0.7978846
    %v411 = vadd.f32 %v403, 0.7978846
    %v412 = vadd.f32 %v404, 0.7978846
    %v413 = vmul.f32 %v338, %v405
    %v414 = vmul.f32 %v340, %v406
    %v415 = vmul.f32 %v381, %v407
    %v416 = vmul.f32 %v383, %v408
    %v417 = vmul.f32 %v342, %v409
    %v418 = vmul.f32 %v344, %v410
    %v419 = vmul.f32 %v385, %v411
    %v420 = vmul.f32 %v387, %v412
    %v421 = vtanh.pop %v413
    %v422 = vtanh.pop %v414
    %v423 = vtanh.pop %v415
    %v424 = vtanh.pop %v416
    %v425 = vtanh.pop %v417
    %v426 = vtanh.pop %v418
    %v427 = vtanh.pop %v419
    %v428 = vtanh.pop %v420
    %v429 = vmul.f32 %v421, 0.5
    %v430 = vmul.f32 %v422, 0.5
    %v431 = vmul.f32 %v423, 0.5
    %v432 = vmul.f32 %v424, 0.5
    %v433 = vmul.f32 %v425, 0.5
    %v434 = vmul.f32 %v426, 0.5
    %v435 = vmul.f32 %v427, 0.5
    %v436 = vmul.f32 %v428, 0.5
    %v437 = vadd.f32 %v429, 0.5
    %v438 = vadd.f32 %v430, 0.5
    %v439 = vadd.f32 %v431, 0.5
    %v440 = vadd.f32 %v432, 0.5
    %v441 = vadd.f32 %v433, 0.5
    %v442 = vadd.f32 %v434, 0.5
    %v443 = vadd.f32 %v435, 0.5
    %v444 = vadd.f32 %v436, 0.5
    %v445 = vmul.f32 %v338, %v437
    %v446 = vmul.f32 %v340, %v438
    %v447 = vmul.f32 %v381, %v439
    %v448 = vmul.f32 %v383, %v440
    %v449 = vmul.f32 %v342, %v441
    %v450 = vmul.f32 %v344, %v442
    %v451 = vmul.f32 %v385, %v443
    %v452 = vmul.f32 %v387, %v444
    %v453 = vld [vmem:[#allocation2] sm:$0xff]
    %v454 = vld [vmem:[#allocation2 + $0x8] sm:$0xff]
    %v455 = vpack.c.bf16 %v449, %v445
    %v456 = vpack.c.bf16 %v450, %v446
    %v457 = vpack.c.bf16 %v451, %v447
    %v458 = vpack.c.bf16 %v452, %v448
    %v459 = vld [vmem:[#allocation9] sm:$0xf]
    %v460 = vld [vmem:[#allocation9 + $0x4] sm:$0xf]
    %v461 = vld [vmem:[#allocation9 + $0x8] sm:$0xf]
    %v462 = vld [vmem:[#allocation9 + $0xc] sm:$0xf]
    %v463 = vld [vmem:[#allocation9 + $0x10] sm:$0xf]
    %v464 = vld [vmem:[#allocation9 + $0x14] sm:$0xf]
    %v465 = vld [vmem:[#allocation9 + $0x18] sm:$0xf]
    %v466 = vld [vmem:[#allocation9 + $0x1c] sm:$0xf]
    %v467 = vld [vmem:[#allocation9 + $0x20] sm:$0xf]
    %v468 = vld [vmem:[#allocation9 + $0x24] sm:$0xf]
    %v469 = vld [vmem:[#allocation9 + $0x28] sm:$0xf]
    %v470 = vld [vmem:[#allocation9 + $0x2c] sm:$0xf]
    %v471 = vld [vmem:[#allocation9 + $0x30] sm:$0xf]
    %v472 = vld [vmem:[#allocation9 + $0x34] sm:$0xf]
    %v473 = vld [vmem:[#allocation9 + $0x38] sm:$0xf]
    %v474 = vld [vmem:[#allocation9 + $0x3c] sm:$0xf]
    %v475 = vld [vmem:[#allocation9 + $0x40] sm:$0xf]
    %v476 = vld [vmem:[#allocation9 + $0x44] sm:$0xf]
    %v477 = vld [vmem:[#allocation9 + $0x48] sm:$0xf]
    %v478 = vld [vmem:[#allocation9 + $0x4c] sm:$0xf]
    %v479 = vld [vmem:[#allocation9 + $0x50] sm:$0xf]
    %v480 = vld [vmem:[#allocation9 + $0x54] sm:$0xf]
    %v481 = vld [vmem:[#allocation9 + $0x58] sm:$0xf]
    %v482 = vld [vmem:[#allocation9 + $0x5c] sm:$0xf]
    %v483 = vld [vmem:[#allocation9 + $0x60] sm:$0xf]
    %v484 = vld [vmem:[#allocation9 + $0x64] sm:$0xf]
    %v485 = vld [vmem:[#allocation9 + $0x68] sm:$0xf]
    %v486 = vld [vmem:[#allocation9 + $0x6c] sm:$0xf]
    %v487 = vld [vmem:[#allocation9 + $0x70] sm:$0xf]
    %v488 = vld [vmem:[#allocation9 + $0x74] sm:$0xf]
    %v489 = vld [vmem:[#allocation9 + $0x78] sm:$0xf]
    %v490 = vld [vmem:[#allocation9 + $0x7c] sm:$0xf]
    %v491 = vld [vmem:[#allocation9 + $0x80] sm:$0xf]
    %v492 = vld [vmem:[#allocation9 + $0x84] sm:$0xf]
    %v493 = vld [vmem:[#allocation9 + $0x88] sm:$0xf]
    %v494 = vld [vmem:[#allocation9 + $0x8c] sm:$0xf]
    %v495 = vld [vmem:[#allocation9 + $0x90] sm:$0xf]
    %v496 = vld [vmem:[#allocation9 + $0x94] sm:$0xf]
    %v497 = vld [vmem:[#allocation9 + $0x98] sm:$0xf]
    %v498 = vld [vmem:[#allocation9 + $0x9c] sm:$0xf]
    %v499 = vld [vmem:[#allocation9 + $0xa0] sm:$0xf]
    %v500 = vld [vmem:[#allocation9 + $0xa4] sm:$0xf]
    %v501 = vld [vmem:[#allocation9 + $0xa8] sm:$0xf]
    %v502 = vld [vmem:[#allocation9 + $0xac] sm:$0xf]
    %v503 = vld [vmem:[#allocation9 + $0xb0] sm:$0xf]
    %v504 = vld [vmem:[#allocation9 + $0xb4] sm:$0xf]
    %v505 = vld [vmem:[#allocation9 + $0xb8] sm:$0xf]
    %v506 = vld [vmem:[#allocation9 + $0xbc] sm:$0xf]
    %v507 = vld [vmem:[#allocation9 + $0xc0] sm:$0xf]
    %v508 = vld [vmem:[#allocation9 + $0xc4] sm:$0xf]
    %v509 = vld [vmem:[#allocation9 + $0xc8] sm:$0xf]
    %v510 = vld [vmem:[#allocation9 + $0xcc] sm:$0xf]
    %v511 = vld [vmem:[#allocation9 + $0xd0] sm:$0xf]
    %v512 = vld [vmem:[#allocation9 + $0xd4] sm:$0xf]
    %v513 = vld [vmem:[#allocation9 + $0xd8] sm:$0xf]
    %v514 = vld [vmem:[#allocation9 + $0xdc] sm:$0xf]
    %v515 = vld [vmem:[#allocation9 + $0xe0] sm:$0xf]
    %v516 = vld [vmem:[#allocation9 + $0xe4] sm:$0xf]
    %v517 = vld [vmem:[#allocation9 + $0xe8] sm:$0xf]
    %v518 = vld [vmem:[#allocation9 + $0xec] sm:$0xf]
    %v519 = vld [vmem:[#allocation9 + $0xf0] sm:$0xf]
    %v520 = vld [vmem:[#allocation9 + $0xf4] sm:$0xf]
    %v521 = vld [vmem:[#allocation9 + $0xf8] sm:$0xf]
    %v522 = vld [vmem:[#allocation9 + $0xfc] sm:$0xf]
    %v587 = vunpack.c.l.b16 %v459
    %v588 = vunpack.c.l.b16 %v460
    %v589 = vunpack.c.l.b16 %v461
    %v590 = vunpack.c.l.b16 %v462
    %v591 = vunpack.c.l.b16 %v463
    %v592 = vunpack.c.l.b16 %v464
    %v593 = vunpack.c.l.b16 %v465
    %v594 = vunpack.c.l.b16 %v466
    %v595 = vunpack.c.l.b16 %v467
    %v596 = vunpack.c.l.b16 %v468
    %v597 = vunpack.c.l.b16 %v469
    %v598 = vunpack.c.l.b16 %v470
    %v599 = vunpack.c.l.b16 %v471
    %v600 = vunpack.c.l.b16 %v472
    %v601 = vunpack.c.l.b16 %v473
    %v602 = vunpack.c.l.b16 %v474
    %v603 = vunpack.c.l.b16 %v475
    %v604 = vunpack.c.l.b16 %v476
    %v605 = vunpack.c.l.b16 %v477
    %v606 = vunpack.c.l.b16 %v478
    %v607 = vunpack.c.l.b16 %v479
    %v608 = vunpack.c.l.b16 %v480
    %v609 = vunpack.c.l.b16 %v481
    %v610 = vunpack.c.l.b16 %v482
    %v611 = vunpack.c.l.b16 %v483
    %v612 = vunpack.c.l.b16 %v484
    %v613 = vunpack.c.l.b16 %v485
    %v614 = vunpack.c.l.b16 %v486
    %v615 = vunpack.c.l.b16 %v487
    %v616 = vunpack.c.l.b16 %v488
    %v617 = vunpack.c.l.b16 %v489
    %v618 = vunpack.c.l.b16 %v490
    %v619 = vunpack.c.l.b16 %v491
    %v620 = vunpack.c.l.b16 %v492
    %v621 = vunpack.c.l.b16 %v493
    %v622 = vunpack.c.l.b16 %v494
    %v623 = vunpack.c.l.b16 %v495
    %v624 = vunpack.c.l.b16 %v496
    %v625 = vunpack.c.l.b16 %v497
    %v626 = vunpack.c.l.b16 %v498
    %v627 = vunpack.c.l.b16 %v499
    %v628 = vunpack.c.l.b16 %v500
    %v629 = vunpack.c.l.b16 %v501
    %v630 = vunpack.c.l.b16 %v502
    %v631 = vunpack.c.l.b16 %v503
    %v632 = vunpack.c.l.b16 %v504
    %v633 = vunpack.c.l.b16 %v505
    %v634 = vunpack.c.l.b16 %v506
    %v635 = vunpack.c.l.b16 %v507
    %v636 = vunpack.c.l.b16 %v508
    %v637 = vunpack.c.l.b16 %v509
    %v638 = vunpack.c.l.b16 %v510
    %v639 = vunpack.c.l.b16 %v511
    %v640 = vunpack.c.l.b16 %v512
    %v641 = vunpack.c.l.b16 %v513
    %v642 = vunpack.c.l.b16 %v514
    %v643 = vunpack.c.l.b16 %v515
    %v644 = vunpack.c.l.b16 %v516
    %v645 = vunpack.c.l.b16 %v517
    %v646 = vunpack.c.l.b16 %v518
    %v647 = vunpack.c.l.b16 %v519
    %v648 = vunpack.c.l.b16 %v520
    %v649 = vunpack.c.l.b16 %v521
    %v650 = vunpack.c.l.b16 %v522
    %v651 = vpack.c.b16 %v588, %v587
    %v652 = vpack.c.b16 %v590, %v589
    %v653 = vpack.c.b16 %v592, %v591
    %v654 = vpack.c.b16 %v594, %v593
    %v655 = vpack.c.b16 %v596, %v595
    %v656 = vpack.c.b16 %v598, %v597
    %v657 = vpack.c.b16 %v600, %v599
    %v658 = vpack.c.b16 %v602, %v601
    %v659 = vpack.c.b16 %v604, %v603
    %v660 = vpack.c.b16 %v606, %v605
    %v661 = vpack.c.b16 %v608, %v607
    %v662 = vpack.c.b16 %v610, %v609
    %v663 = vpack.c.b16 %v612, %v611
    %v664 = vpack.c.b16 %v614, %v613
    %v665 = vpack.c.b16 %v616, %v615
    %v666 = vpack.c.b16 %v618, %v617
    %v667 = vpack.c.b16 %v620, %v619
    %v668 = vpack.c.b16 %v622, %v621
    %v669 = vpack.c.b16 %v624, %v623
    %v670 = vpack.c.b16 %v626, %v625
    %v671 = vpack.c.b16 %v628, %v627
    %v672 = vpack.c.b16 %v630, %v629
    %v673 = vpack.c.b16 %v632, %v631
    %v674 = vpack.c.b16 %v634, %v633
    %v675 = vpack.c.b16 %v636, %v635
    %v676 = vpack.c.b16 %v638, %v637
    %v677 = vpack.c.b16 %v640, %v639
    %v678 = vpack.c.b16 %v642, %v641
    %v679 = vpack.c.b16 %v644, %v643
    %v680 = vpack.c.b16 %v646, %v645
    %v681 = vpack.c.b16 %v648, %v647
    %v682 = vpack.c.b16 %v650, %v649
    %715 = vmatprep.subr.bf16.mxu0 0
    %716 = vmatpush1.bf16.msra.mxu0 %v658
    %717 = vmatprep.subr.bf16.mxu0 0
    %718 = vmatpush1.bf16.msra.mxu0 %v657
    %719 = vmatprep.subr.bf16.mxu0 0
    %720 = vmatpush1.bf16.msra.mxu0 %v656
    %721 = vmatprep.subr.bf16.mxu0 0
    %722 = vmatpush1.bf16.msra.mxu0 %v655
    %723 = vmatprep.subr.bf16.mxu0 0
    %724 = vmatpush1.bf16.msra.mxu0 %v654
    %725 = vmatprep.subr.bf16.mxu0 0
    %726 = vmatpush1.bf16.msra.mxu0 %v653
    %727 = vmatprep.subr.bf16.mxu0 0
    %728 = vmatpush1.bf16.msra.mxu0 %v652
    %729 = vmatprep.subr.bf16.mxu0 0
    %730 = vmatpush1.bf16.msra.mxu0 %v651
    %731 = vmatprep.subr.bf16.mxu0 0
    %732 = vmatpush2.bf16.msra.mxu0 %v666
    %733 = vmatprep.subr.bf16.mxu0 0
    %734 = vmatpush2.bf16.msra.mxu0 %v665
    %735 = vmatprep.subr.bf16.mxu0 0
    %736 = vmatpush2.bf16.msra.mxu0 %v664
    %737 = vmatprep.subr.bf16.mxu0 0
    %738 = vmatpush2.bf16.msra.mxu0 %v663
    %739 = vmatprep.subr.bf16.mxu0 0
    %740 = vmatpush2.bf16.msra.mxu0 %v662
    %741 = vmatprep.subr.bf16.mxu0 0
    %742 = vmatpush2.bf16.msra.mxu0 %v661
    %743 = vmatprep.subr.bf16.mxu0 0
    %744 = vmatpush2.bf16.msra.mxu0 %v660
    %745 = vmatprep.subr.bf16.mxu0 0
    %746 = vmatpush2.bf16.msra.mxu0 %v659
    %747 = vmatprep.mubr.bf16.mxu0 %v456
    %748 = vmatmul.mubr.bf16.gmra.mxu0 %v455
    %v749 = vpop.f32.mrf.mxu0
    %v750 = vadd.f32 0.0, %v749
    %v751 = vpop.f32.mrf.mxu0
    %v752 = vpop.f32.mrf.mxu0
    %v753 = vadd.f32 0.0, %v752
    %v754 = vpop.f32.mrf.mxu0
    %755 = vdwg.mxu0
    %756 = vmatprep.subr.bf16.mxu0 0
    %757 = vmatpush1.bf16.msra.mxu0 %v674
    %758 = vmatprep.subr.bf16.mxu0 0
    %759 = vmatpush1.bf16.msra.mxu0 %v673
    %760 = vmatprep.subr.bf16.mxu0 0
    %761 = vmatpush1.bf16.msra.mxu0 %v672
    %762 = vmatprep.subr.bf16.mxu0 0
    %763 = vmatpush1.bf16.msra.mxu0 %v671
    %764 = vmatprep.subr.bf16.mxu0 0
    %765 = vmatpush1.bf16.msra.mxu0 %v670
    %766 = vmatprep.subr.bf16.mxu0 0
    %767 = vmatpush1.bf16.msra.mxu0 %v669
    %768 = vmatprep.subr.bf16.mxu0 0
    %769 = vmatpush1.bf16.msra.mxu0 %v668
    %770 = vmatprep.subr.bf16.mxu0 0
    %771 = vmatpush1.bf16.msra.mxu0 %v667
    %772 = vmatprep.subr.bf16.mxu0 0
    %773 = vmatpush2.bf16.msra.mxu0 %v682
    %774 = vmatprep.subr.bf16.mxu0 0
    %775 = vmatpush2.bf16.msra.mxu0 %v681
    %776 = vmatprep.subr.bf16.mxu0 0
    %777 = vmatpush2.bf16.msra.mxu0 %v680
    %778 = vmatprep.subr.bf16.mxu0 0
    %779 = vmatpush2.bf16.msra.mxu0 %v679
    %780 = vmatprep.subr.bf16.mxu0 0
    %781 = vmatpush2.bf16.msra.mxu0 %v678
    %782 = vmatprep.subr.bf16.mxu0 0
    %783 = vmatpush2.bf16.msra.mxu0 %v677
    %784 = vmatprep.subr.bf16.mxu0 0
    %785 = vmatpush2.bf16.msra.mxu0 %v676
    %786 = vmatprep.subr.bf16.mxu0 0
    %787 = vmatpush2.bf16.msra.mxu0 %v675
    %788 = vmatprep.mubr.bf16.mxu0 %v458
    %789 = vmatmul.mubr.bf16.gmra.mxu0 %v457
    %v790 = vpop.f32.mrf.mxu0
    %v791 = vadd.f32 %v750, %v790
    %v792 = vpop.f32.mrf.mxu0
    %v793 = vpop.f32.mrf.mxu0
    %v794 = vadd.f32 %v753, %v793
    %v795 = vpop.f32.mrf.mxu0
    %796 = vdwg.mxu0
    %v797 = vadd.f32 %v453, %v791
    %v798 = vadd.f32 %v454, %v794
    %799 = vst [vmem:[#allocation2] sm:$0xff] %v797
    %800 = vst [vmem:[#allocation2 + $0x8] sm:$0xff] %v798
    // Predicated region
    $region42: #{tpu_custom_call.1} parent=1 // pred_check
      %p801 = pneg %p75
    $region43: #{tpu_custom_call.1} parent=1 // pred_check_branch
      %803 = sbr.rel (%p801) target = $region45
    $region44: #{tpu_custom_call.1} parent=1 // pred_region
      %v804 = vld [vmem:[#allocation2] sm:$0xff]
      %v805 = vld [vmem:[#allocation2 + $0x8] sm:$0xff]
      %v806 = vld [vmem:[%s4] sm:$0x1]
      %v808 = vlaneseq
      %v809 = vshrl.u32 %v808, 7
      %v810 = vsub.s32 0, %v809
      %v811 = vrot.slane %v806, %v810
      %v813 = vadd.f32 %v804, %v811
      %v814 = vadd.f32 %v805, %v811
      %815 = vst [vmem:[#allocation11] sm:$0xff] %v813
      %816 = vst [vmem:[#allocation11 + $0x8] sm:$0xff] %v814
    $region45: #{tpu_custom_call.1} parent=1 // pred_fallthru
      _
    // Predicated region
    $region46: #{tpu_custom_call.1} parent=1 // pred_check
      _
    $region47: #{tpu_custom_call.1} parent=1 // pred_check_branch
      %818 = sbr.rel (0) target = $region49
    $region48: #{tpu_custom_call.1} parent=1 // pred_region
      %s820 = ssub.s32 256, 256
      %821 = vsyncadd [#allocation5], %s820
      %s822 = sshll.u32 [#allocation11], 4
      %s823 = int_to_ptr.vmem [resolvable:$true] %s822
      %828 = dma.vmem_to_hbm [thread:$0]  %s823, 256, %s5, [#allocation5], 128, 128, 8
    $region49: #{tpu_custom_call.1} parent=1 // pred_fallthru
      _
    // Predicated region
    $region50: #{tpu_custom_call.1} parent=1 // pred_check
      _
    $region51: #{tpu_custom_call.1} parent=1 // pred_check_branch
      %830 = sbr.rel (0) target = $region53
    $region52: #{tpu_custom_call.1} parent=1 // pred_region
      %831 = dma.done [#allocation5], 256
    $region53: #{tpu_custom_call.1} parent=1 // pred_fallthru
      _
    %832 = vsyncpa [#allocation4], 1
    %833 = vsyncpa [#allocation7], 1
    %834 = vsyncpa [#allocation10], 1
    %835 = vsyncpa [#allocation5], 1

</llo_original>
